<compile_context>
chip_gen: v7x
topology: tpu7x:2x2x1
jax: 0.10.0
libtpu: 0.0.40
codegen_flags: <defaults>
</compile_context>

<pallas_src>
import functools

import jax
import jax.numpy as jnp
from jax.experimental import pallas as pl
from jax.experimental.pallas import tpu as pltpu

_MiB = 1024 * 1024


def _round_up(x, m):
    return (x + m - 1) // m * m


def _footprint_bytes(tm, tk, dp):
    """VMEM bytes for one grid step's buffer set (double-buffered)."""
    return (2 * tm * tk * 4      # x K-slice (f32), 2 buffers
            + 2 * tk * dp * 2    # W^T K-block (bf16), 2 buffers
            + 2 * tm * dp * 4    # resident f32 output block, 2 buffers
            + 2 * 3 * dp * 4)    # (1, Dp) params


def _pick_tiles(rows, dp, tile_budget):
    """Largest (tm, tk) fitting the VMEM budget; tm is the primary lever."""
    rows8 = _round_up(rows, 8)
    tm_cands = {t for t in (512, 384, 256, 128, 64, 32, 16, 8) if t <= rows8}
    if rows8 <= 512:
        tm_cands.add(rows8)
    tm_cands = sorted(tm_cands, reverse=True)
    tk_cands = [c for c in (512, 384, 256, 128) if c <= dp and dp % c == 0] or [dp]
    for tm in tm_cands:          # prefer bigger row tile (arithmetic intensity)
        for tk in tk_cands:      # then bigger K block (fewer K steps)
            if _footprint_bytes(tm, tk, dp) <= tile_budget:
                return tm, tk
    return tm_cands[-1], tk_cands[-1]


def _sublayer_kernel(xk_ref, wt_ref, b_ref, gain_ref, bias_ref, o_ref, *,
                     eps, d_real, d_pad):
    """One (row-tile, k-block) grid step.

    xk_ref: (tm, tk) f32   K-slice of x (matmul LHS *and* residual slice)
    wt_ref: (tk, Dp) bf16  K-block of W^T
    b/gain/bias_ref: (1, Dp) f32
    o_ref:  (tm, Dp) f32   resident output block == accumulator
    """
    k = pl.program_id(1)
    nk = pl.num_programs(1)
    tk = xk_ref.shape[1]

    @pl.when(k == 0)
    def _init():
        o_ref[...] = jnp.zeros_like(o_ref)

    x_f32 = xk_ref[...].astype(jnp.float32)

    # bf16 x bf16 -> f32 accumulate on the MXU, straight into the resident
    # output block (no separate accumulator scratch).
    o_ref[...] += jnp.dot(x_f32.astype(jnp.bfloat16), wt_ref[...],
                          preferred_element_type=jnp.float32)

    # Residual: with D_out == D_in the k-th LHS slice is exactly the residual
    # contribution to output columns [k*tk, (k+1)*tk).  Added in exact f32.
    col = pl.multiple_of(k * tk, 128)
    o_ref[:, pl.ds(col, tk)] += x_f32

    @pl.when(k == nk - 1)
    def _finalize():
        b = b_ref[...]
        gain = gain_ref[...]
        bias = bias_ref[...]

        # Padded columns of y are exact zeros (zero-padded weights, bias, x).
        y = o_ref[...] + b

        mean = jnp.sum(y, axis=-1, keepdims=True) * (1.0 / d_real)
        centered = y - mean
        if d_pad != d_real:
            # Two-pass variance: padded columns of `centered` equal -mean, so
            # mask them out of the reduction (numerically safer than ssq-D*m^2).
            cidx = jax.lax.broadcasted_iota(jnp.int32, centered.shape, 1)
            centered_v = jnp.where(cidx < d_real, centered, 0.0)
        else:
            centered_v = centered
        var = jnp.sum(centered_v * centered_v, axis=-1, keepdims=True) \
            * (1.0 / max(d_real - 1, 1))                     # unbiased (torch std)
        std = jnp.sqrt(var)

        inv = pl.reciprocal(std + eps, approx=False)          # exact, once per tile
        o_ref[...] = (gain * centered * inv + bias).astype(o_ref.dtype)


def prepare_sublayer_params(w, b, gain, bias):
    """Static-parameter prep (transpose + pad + bf16 cast).  Hoist out of the
    per-call path when the weights do not change between calls."""
    d = w.shape[0]
    dp = _round_up(d, 128)
    wt = w.T                                  # (in, out): kernel does x @ W^T
    if dp != d:
        wt = jnp.pad(wt, ((0, dp - d), (0, dp - d)))
        b = jnp.pad(b, (0, dp - d))
        gain = jnp.pad(gain, (0, dp - d))
        bias = jnp.pad(bias, (0, dp - d))
    wt_bf = wt.astype(jnp.bfloat16)
    return (wt_bf,
            b.reshape(1, dp).astype(jnp.float32),
            gain.reshape(1, dp).astype(jnp.float32),
            bias.reshape(1, dp).astype(jnp.float32))


def sublayer_forward(x, w, b, gain, bias, *, eps=1e-6, params=None):
    """x: (B, S, D).  w: (D, D) torch-Linear weight (out, in).  b/gain/bias: (D,)."""
    B, S, D = x.shape
    rows = B * S
    Dp = _round_up(D, 128)

    if params is None:
        params = prepare_sublayer_params(w, b, gain, bias)
    wt_bf, b2, gain2, bias2 = params

    # --- VMEM budget / tile selection ---------------------------------------
    try:
        vmem_cap = int(pltpu.get_tpu_info().vmem_capacity_bytes)
    except Exception:
        vmem_cap = 64 * _MiB                       # conservative (v7x per-TC)
    budget = min(vmem_cap * 3 // 4, 100 * _MiB)    # v5e/v6e -> 96 MiB, v7x -> 48 MiB
    tm, tk = _pick_tiles(rows, Dp, budget - 8 * _MiB)

    # v7x (2 TensorCores, 64 MiB VMEM): keep >= 2 row tiles so both TCs get work.
    if vmem_cap <= 64 * _MiB and rows > 8 and pl.cdiv(rows, tm) < 2:
        tm = max(8, _round_up((rows + 1) // 2, 8))

    rows_p = _round_up(rows, tm)
    vmem_limit = int(min(budget, max(32 * _MiB, _footprint_bytes(tm, tk, Dp) + 12 * _MiB)))

    # --- x prep: single f32 stream, pad only if needed -----------------------
    x2 = x.reshape(rows, D)
    if rows_p != rows or Dp != D:
        x2 = jnp.pad(x2, ((0, rows_p - rows), (0, Dp - D)))

    grid = (rows_p // tm, Dp // tk)
    kernel = functools.partial(_sublayer_kernel, eps=eps, d_real=D, d_pad=Dp)

    out2 = pl.pallas_call(
        kernel,
        out_shape=jax.ShapeDtypeStruct((rows_p, Dp), jnp.float32),
        grid_spec=pltpu.PrefetchScalarGridSpec(
            num_scalar_prefetch=0,
            grid=grid,
            in_specs=[
                pl.BlockSpec((tm, tk), lambda i, k: (i, k)),   # x K-slice (LHS + residual)
                pl.BlockSpec((tk, Dp), lambda i, k: (k, 0)),   # W^T K-block
                pl.BlockSpec((1, Dp), lambda i, k: (0, 0)),    # linear bias
                pl.BlockSpec((1, Dp), lambda i, k: (0, 0)),    # LN gain
                pl.BlockSpec((1, Dp), lambda i, k: (0, 0)),    # LN bias
            ],
            out_specs=pl.BlockSpec((tm, Dp), lambda i, k: (i, 0)),  # resident over k
        ),
        compiler_params=pltpu.CompilerParams(
            dimension_semantics=("parallel", "arbitrary"),
            vmem_limit_bytes=vmem_limit,
        ),
    )(x2, wt_bf, b2, gain2, bias2)

    if rows_p != rows or Dp != D:
        out2 = out2[:rows, :D]
    return out2.reshape(B, S, D).astype(x.dtype)


def _reference(x, w, b, gain, bias, eps=1e-6):
    y = jnp.einsum("bsd,ed->bse", x, w) + b + x
    mean = jnp.mean(y, axis=-1, keepdims=True)
    centered = y - mean
    var_unbiased = jnp.sum(centered * centered, axis=-1, keepdims=True) / (x.shape[-1] - 1)
    std = jnp.sqrt(var_unbiased)
    return gain * centered / (std + eps) + bias


if __name__ == "__main__":
    B, S, D = 2, 8, 32
    key = jax.random.PRNGKey(0)
    kx, kw, kb = jax.random.split(key, 3)

    x = jax.random.normal(kx, (B, S, D), dtype=jnp.float32)
    # Deterministic "Linear(d_model, d_model)" parameters (synthetic).
    w = jax.random.normal(kw, (D, D), dtype=jnp.float32) * (1.0 / jnp.sqrt(D))
    b = jax.random.normal(kb, (D,), dtype=jnp.float32) * 0.01
    # LayerNormalization parameters as in __init__: gain = ones, bias = zeros.
    gain = jnp.ones((D,), dtype=jnp.float32)
    bias = jnp.zeros((D,), dtype=jnp.float32)

    # Hoist the static-weight prep out of the per-call path, then run the kernel.
    params = prepare_sublayer_params(w, b, gain, bias)
    out = sublayer_forward(x, w, b, gain, bias, params=params)
    jax.block_until_ready(out)

    ref = _reference(x, w, b, gain, bias)
    assert out.shape == (B, S, D)
    # bf16 MXU operands -> slightly looser tolerance than pure f32.
    assert jnp.allclose(out, ref, atol=5e-2, rtol=5e-2), "mismatch vs pure-JAX reference"
    print("KERNEL_OK")
</pallas_src>

<mosaic_0001>
module attributes {stable_mosaic.version = 11 : i64} {
  func.func @_sublayer_kernel(%arg0: i32, %arg1: i32, %arg2: memref<8x128xf32, #tpu.memory_space<vmem>>, %arg3: memref<128x128xbf16, #tpu.memory_space<vmem>>, %arg4: memref<1x128xf32, #tpu.memory_space<vmem>>, %arg5: memref<1x128xf32, #tpu.memory_space<vmem>>, %arg6: memref<1x128xf32, #tpu.memory_space<vmem>>, %arg7: memref<8x128xf32, #tpu.memory_space<vmem>>) attributes {dimension_semantics = [#tpu.dimension_semantics<parallel>, #tpu.dimension_semantics<arbitrary>], iteration_bounds = array<i64: 2, 1>, scalar_prefetch = 0 : i64, scratch_operands = 0 : i64, tpu.core_type = #tpu.core_type<tc>, window_params = [{transform_indices = @transform_0, window_bounds = array<i64: 8, 128>}, {transform_indices = @transform_1, window_bounds = array<i64: 128, 128>}, {pipeline_mode = #tpu.pipeline_mode<synchronous>, transform_indices = @transform_2, window_bounds = array<i64: 1, 128>}, {pipeline_mode = #tpu.pipeline_mode<synchronous>, transform_indices = @transform_3, window_bounds = array<i64: 1, 128>}, {pipeline_mode = #tpu.pipeline_mode<synchronous>, transform_indices = @transform_4, window_bounds = array<i64: 1, 128>}, {transform_indices = @transform_5, window_bounds = array<i64: 8, 128>}]} {
    %c0_i32 = arith.constant 0 : i32
    %0 = arith.cmpi eq, %arg1, %c0_i32 : i32
    %1 = arith.extui %0 : i1 to i32
    %c0_i32_0 = arith.constant 0 : i32
    %2 = arith.cmpi ne, %1, %c0_i32_0 : i32
    scf.if %2 {
      %cst_12 = arith.constant 0.000000e+00 : f32
      %20 = vector.broadcast %cst_12 : f32 to vector<8x128xf32>
      %c0_13 = arith.constant 0 : index
      %c0_14 = arith.constant 0 : index
      %21 = vector.load %arg7[%c0_13, %c0_14] : memref<8x128xf32, #tpu.memory_space<vmem>>, vector<8x128xf32>
      tpu.vector_store %arg7[%c0_13, %c0_14], %20 {strides = array<i32>} : memref<8x128xf32, #tpu.memory_space<vmem>>, vector<8x128xf32>,
    } else {
    }
    %c0 = arith.constant 0 : index
    %c0_1 = arith.constant 0 : index
    %3 = vector.load %arg2[%c0, %c0_1] : memref<8x128xf32, #tpu.memory_space<vmem>>, vector<8x128xf32>
    %c0_2 = arith.constant 0 : index
    %c0_3 = arith.constant 0 : index
    %4 = vector.load %arg7[%c0_2, %c0_3] : memref<8x128xf32, #tpu.memory_space<vmem>>, vector<8x128xf32>
    %5 = arith.truncf %3 : vector<8x128xf32> to vector<8x128xbf16>
    %c0_4 = arith.constant 0 : index
    %c0_5 = arith.constant 0 : index
    %6 = vector.load %arg3[%c0_4, %c0_5] : memref<128x128xbf16, #tpu.memory_space<vmem>>, vector<128x128xbf16>
    %cst = arith.constant dense<0.000000e+00> : vector<8x128xf32>
    %7 = tpu.matmul %5, %6, %cst {dimension_numbers = #tpu.dot_dimension_numbers<[1], [0], [0], [1], [0, 0, 1, 1], [], []>} : vector<8x128xbf16>, vector<128x128xbf16>, vector<8x128xf32> -> vector<8x128xf32>
    %8 = arith.addf %4, %7 : vector<8x128xf32>
    %c0_6 = arith.constant 0 : index
    %c0_7 = arith.constant 0 : index
    %9 = vector.load %arg7[%c0_6, %c0_7] : memref<8x128xf32, #tpu.memory_space<vmem>>, vector<8x128xf32>
    tpu.vector_store %arg7[%c0_6, %c0_7], %8 {strides = array<i32>} : memref<8x128xf32, #tpu.memory_space<vmem>>, vector<8x128xf32>,
    %c128_i32 = arith.constant 128 : i32
    %10 = arith.muli %arg1, %c128_i32 : i32
    %11 = tpu.assume_multiple %10, 128 : i32
    %c0_8 = arith.constant 0 : index
    %12 = arith.index_cast %11 : i32 to index
    %13 = vector.load %arg7[%c0_8, %12] : memref<8x128xf32, #tpu.memory_space<vmem>>, vector<8x128xf32>
    %14 = arith.addf %13, %3 : vector<8x128xf32>
    %c0_9 = arith.constant 0 : index
    %15 = arith.index_cast %11 : i32 to index
    %16 = vector.load %arg7[%c0_9, %15] : memref<8x128xf32, #tpu.memory_space<vmem>>, vector<8x128xf32>
    tpu.vector_store %arg7[%c0_9, %15], %14 {strides = array<i32>} : memref<8x128xf32, #tpu.memory_space<vmem>>, vector<8x128xf32>,
    %c0_i32_10 = arith.constant 0 : i32
    %17 = arith.cmpi eq, %arg1, %c0_i32_10 : i32
    %18 = arith.extui %17 : i1 to i32
    %c0_i32_11 = arith.constant 0 : i32
    %19 = arith.cmpi ne, %18, %c0_i32_11 : i32
    scf.if %19 {
      %c0_12 = arith.constant 0 : index
      %c0_13 = arith.constant 0 : index
      %20 = vector.load %arg4[%c0_12, %c0_13] : memref<1x128xf32, #tpu.memory_space<vmem>>, vector<1x128xf32>
      %c0_14 = arith.constant 0 : index
      %c0_15 = arith.constant 0 : index
      %21 = vector.load %arg5[%c0_14, %c0_15] : memref<1x128xf32, #tpu.memory_space<vmem>>, vector<1x128xf32>
      %c0_16 = arith.constant 0 : index
      %c0_17 = arith.constant 0 : index
      %22 = vector.load %arg6[%c0_16, %c0_17] : memref<1x128xf32, #tpu.memory_space<vmem>>, vector<1x128xf32>
      %c0_18 = arith.constant 0 : index
      %c0_19 = arith.constant 0 : index
      %23 = vector.load %arg7[%c0_18, %c0_19] : memref<8x128xf32, #tpu.memory_space<vmem>>, vector<8x128xf32>
      %24 = vector.broadcast %20 : vector<1x128xf32> to vector<8x128xf32>
      %25 = arith.addf %23, %24 : vector<8x128xf32>
      %cst_20 = arith.constant dense<0.000000e+00> : vector<8xf32>
      %26 = vector.multi_reduction <add>, %25, %cst_20 [1] : vector<8x128xf32> to vector<8xf32>
      %27 = vector.shape_cast %26 : vector<8xf32> to vector<8x1xf32>
      %cst_21 = arith.constant 3.125000e-02 : f32
      %28 = vector.broadcast %cst_21 : f32 to vector<8x1xf32>
      %29 = arith.mulf %27, %28 : vector<8x1xf32>
      %30 = vector.broadcast %29 : vector<8x1xf32> to vector<8x128xf32>
      %31 = arith.subf %25, %30 : vector<8x128xf32>
      %32 = tpu.iota {dimensions = array<i32: 1>} : vector<8x128xi32>
      %c32_i32 = arith.constant 32 : i32
      %33 = vector.broadcast %c32_i32 : i32 to vector<8x128xi32>
      %34 = arith.cmpi slt, %32, %33 : vector<8x128xi32>
      %cst_22 = arith.constant 0.000000e+00 : f32
      %35 = vector.broadcast %cst_22 : f32 to vector<8x128xf32>
      %36 = arith.select %34, %31, %35 : vector<8x128xi1>, vector<8x128xf32>
      %37 = arith.mulf %36, %36 : vector<8x128xf32>
      %cst_23 = arith.constant dense<0.000000e+00> : vector<8xf32>
      %38 = vector.multi_reduction <add>, %37, %cst_23 [1] : vector<8x128xf32> to vector<8xf32>
      %39 = vector.shape_cast %38 : vector<8xf32> to vector<8x1xf32>
      %cst_24 = arith.constant 0.0322580636 : f32
      %40 = vector.broadcast %cst_24 : f32 to vector<8x1xf32>
      %41 = arith.mulf %39, %40 : vector<8x1xf32>
      %42 = math.sqrt %41 : vector<8x1xf32>
      %cst_25 = arith.constant 9.99999997E-7 : f32
      %43 = vector.broadcast %cst_25 : f32 to vector<8x1xf32>
      %44 = arith.addf %42, %43 : vector<8x1xf32>
      %45 = tpu.reciprocal %44 : vector<8x1xf32> -> vector<8x1xf32>
      %46 = vector.broadcast %21 : vector<1x128xf32> to vector<8x128xf32>
      %47 = arith.mulf %46, %31 : vector<8x128xf32>
      %48 = vector.broadcast %45 : vector<8x1xf32> to vector<8x128xf32>
      %49 = arith.mulf %47, %48 : vector<8x128xf32>
      %50 = vector.broadcast %22 : vector<1x128xf32> to vector<8x128xf32>
      %51 = arith.addf %49, %50 : vector<8x128xf32>
      %c0_26 = arith.constant 0 : index
      %c0_27 = arith.constant 0 : index
      %52 = vector.load %arg7[%c0_26, %c0_27] : memref<8x128xf32, #tpu.memory_space<vmem>>, vector<8x128xf32>
      tpu.vector_store %arg7[%c0_26, %c0_27], %51 {strides = array<i32>} : memref<8x128xf32, #tpu.memory_space<vmem>>, vector<8x128xf32>,
    } else {
    }
    return
  }
  func.func @transform_0(%arg0: i32, %arg1: i32) -> (i32, i32) {
    %c0_i32 = arith.constant 0 : i32
    return %arg0, %arg1 : i32, i32
  }
  func.func @transform_1(%arg0: i32, %arg1: i32) -> (i32, i32) {
    %c0_i32 = arith.constant 0 : i32
    %c0_i32_0 = arith.constant 0 : i32
    return %arg1, %c0_i32 : i32, i32
  }
  func.func @transform_2(%arg0: i32, %arg1: i32) -> (i32, i32) {
    %c0_i32 = arith.constant 0 : i32
    %c0_i32_0 = arith.constant 0 : i32
    %c0_i32_1 = arith.constant 0 : i32
    return %c0_i32, %c0_i32_0 : i32, i32
  }
  func.func @transform_3(%arg0: i32, %arg1: i32) -> (i32, i32) {
    %c0_i32 = arith.constant 0 : i32
    %c0_i32_0 = arith.constant 0 : i32
    %c0_i32_1 = arith.constant 0 : i32
    return %c0_i32, %c0_i32_0 : i32, i32
  }
  func.func @transform_4(%arg0: i32, %arg1: i32) -> (i32, i32) {
    %c0_i32 = arith.constant 0 : i32
    %c0_i32_0 = arith.constant 0 : i32
    %c0_i32_1 = arith.constant 0 : i32
    return %c0_i32, %c0_i32_0 : i32, i32
  }
  func.func @transform_5(%arg0: i32, %arg1: i32) -> (i32, i32) {
    %c0_i32 = arith.constant 0 : i32
    %c0_i32_0 = arith.constant 0 : i32
    return %arg0, %c0_i32 : i32, i32
  }
}

</mosaic_0001>

<llo_original>
// kernel: tpu_custom_call.1
$region0: #{tpu_custom_call.1}
  #allocation0 [shape = 'u32[]', space=smem, size = 0x4, offset = 0x4, fixed_abs, tag = 'smem constant byte address 0x4 - core index']
  #allocation1 [shape = 'u32[144,128]{1,0:T(1,128)}', space=vmem, size = 0x12000, scoped, tag = 'internal scratch']
  %s0 = inlined_call_operand.hbm [shape: f32[16,128], index: 0, kind: input, shape index: {}]
  %s1 = inlined_call_operand.hbm [shape: bf16[128,128], index: 1, kind: input, shape index: {}]
  %s2 = inlined_call_operand.vmem [shape: f32[1,128], index: 2, kind: input, shape index: {}]
  %s3 = inlined_call_operand.vmem [shape: f32[1,128], index: 3, kind: input, shape index: {}]
  %s4 = inlined_call_operand.vmem [shape: f32[1,128], index: 4, kind: input, shape index: {}]
  %s5 = inlined_call_operand.hbm [shape: f32[16,128], index: 5, kind: output, shape index: {}]
  %s6 = sld [smem:[#allocation0]]
  $region69: #{tpu_custom_call.1} parent=0
    _
  %s8 = ssub.s32 1, %s6
  %s9 = scalar_select 0, %s8, %s6
  $region1: #{tpu_custom_call.1} parent=0
    #allocation2 [shape = 'u8[8192]{0}', space=vmem, size = 0x2000, scoped, tag = 'input window, operand 0']
    #allocation3 [shape = 's32[2]{0}', space=sflag, size = 0x8, scoped, tag = 'scoped memory for tpu_custom_call.1']
    #allocation4 [shape = 's32[2]{0}', space=sflag, size = 0x8, scoped, tag = 'scoped memory for tpu_custom_call.1']
    #allocation5 [shape = 'u8[32768]{0}', space=vmem, size = 0x8000, scoped, tag = 'input window, operand 1, single buffered']
    #allocation6 [shape = 's32[1]{0}', space=sflag, size = 0x4, scoped, tag = 'scoped memory for tpu_custom_call.1']
    #allocation7 [shape = 'u8[8192]{0}', space=vmem, size = 0x2000, scoped, tag = 'output window, operand 0']
    %10 = vsyncpa [#allocation3], 0
    %s11 = scalar_lea.sflag [#allocation3], 1
    %12 = vsyncpa %s11, 0
    %13 = vsyncpa [#allocation6], 0
    %14 = vsyncpa [#allocation4], 0
    %s15 = scalar_lea.sflag [#allocation4], 1
    %16 = vsyncpa %s15, 0
    loop: start=0, step=1, limit=4
    $region2: #{tpu_custom_call.1} parent=1 // loop_pre_header
      _
    $region3: #{tpu_custom_call.1} parent=1 // loop_header
      %s18 = sphi 0, %s22
      %p19 = scmp.ge.s32.totalorder %s18, 4
      %s25 = sphi 0, %s37
      %s26 = sphi 0, %s33
      %s27 = sphi 0, %s25
      %s28 = sphi 0, %s26
      %s29 = sphi 0, %s27
      %s30 = sphi 0, %s28
      %s42 = sphi 0, %s44
      %s45 = sphi 0, %s42
      %s46 = sphi 0, %s45
      %s62 = sphi 0, %s46
      %s68 = sphi 0, %s70
      %s71 = sphi 0, %s68
      %s72 = sphi 0, %s71
      %s88 = sphi 0, %s72
      %s92 = sphi 0, %s92
      %s94 = sphi 0, %s92
      %s95 = sphi 0, %s94
      %s109 = sphi 0, %s95
      %s113 = sphi 0, %s113
      %s115 = sphi 0, %s113
      %s116 = sphi 0, %s115
      %s130 = sphi 0, %s116
      %s134 = sphi 0, %s134
      %s136 = sphi 0, %s134
      %s137 = sphi 0, %s136
      %s151 = sphi 0, %s137
      %s157 = sphi 0, %s159
      %s160 = sphi 0, %s157
      %s161 = sphi 0, %s160
      %s177 = sphi 0, %s161
    $region4: #{tpu_custom_call.1} parent=1 // loop_header_branch
      %21 = sbr.rel (%p19) target = $region8
    $region5: #{tpu_custom_call.1} parent=1 // loop_body
      %s23 = ssub.s32 %s18, 1
      %s24 = ssub.s32 %s18, 2
      %s31 = sadd.s32 1, %s26
      %p32 = scmp.ge.s32.totalorder %s31, 1
      %s33 = scalar_select %p32, 0, %s31
      %s34 = sadd.s32 1, %s25
      %s35 = scalar_select %p32, %s34, %s25
      %p36 = scmp.ge.s32.totalorder %s35, 2
      %s37 = scalar_select %p36, 0, %s35
      %s38 = ssub.s32 %s25, %s37
      %s39 = ssub.s32 %s26, %s33
      %s40 = sor.u32 %s38, %s39
      %p41 = scmp.eq.s32.totalorder %s40, 0
      %s43 = sadd.s32 %s42, 1
      %s44 = scalar_select %p41, %s42, %s43
      %p47 = pneg %p41
      %p48 = scmp.eq.s32.totalorder %s18, 1
      %p49 = por %p47, %p48
      %p50 = scmp.ne.s32.totalorder %s42, %s45
      %p51 = scmp.eq.s32.totalorder %s18, 0
      %p52 = por %p50, %p51
      %p53 = scmp.ne.s32.totalorder %s42, %s45
      %p54 = scmp.eq.s32.totalorder %s23, 1
      %p55 = por %p53, %p54
      %p56 = scmp.ne.s32.totalorder %s45, %s46
      %p57 = scmp.eq.s32.totalorder %s23, 0
      %p58 = por %p56, %p57
      %p59 = scmp.ne.s32.totalorder %s45, %s46
      %p60 = scmp.eq.s32.totalorder %s24, 1
      %p61 = por %p59, %p60
      %p63 = scmp.ne.s32.totalorder %s46, %s62
      %p64 = scmp.eq.s32.totalorder %s24, 0
      %p65 = por %p63, %p64
      %s66 = ssub.s32 %s26, %s33
      %p67 = scmp.eq.s32.totalorder %s66, 0
      %s69 = sadd.s32 %s68, 1
      %s70 = scalar_select %p67, %s68, %s69
      %p73 = pneg %p67
      %p74 = scmp.eq.s32.totalorder %s18, 1
      %p75 = por %p73, %p74
      %p76 = scmp.ne.s32.totalorder %s68, %s71
      %p77 = scmp.eq.s32.totalorder %s18, 0
      %p78 = por %p76, %p77
      %p79 = scmp.ne.s32.totalorder %s68, %s71
      %p80 = scmp.eq.s32.totalorder %s23, 1
      %p81 = por %p79, %p80
      %p82 = scmp.ne.s32.totalorder %s71, %s72
      %p83 = scmp.eq.s32.totalorder %s23, 0
      %p84 = por %p82, %p83
      %p85 = scmp.ne.s32.totalorder %s71, %s72
      %p86 = scmp.eq.s32.totalorder %s24, 1
      %p87 = por %p85, %p86
      %p89 = scmp.ne.s32.totalorder %s72, %s88
      %p90 = scmp.eq.s32.totalorder %s24, 0
      %p91 = por %p89, %p90
      %s93 = sadd.s32 %s92, 1
      %p96 = scmp.eq.s32.totalorder %s18, 1
      %p97 = scmp.ne.s32.totalorder %s92, %s94
      %p98 = scmp.eq.s32.totalorder %s18, 0
      %p99 = por %p97, %p98
      %p100 = scmp.ne.s32.totalorder %s92, %s94
      %p101 = scmp.eq.s32.totalorder %s23, 1
      %p102 = por %p100, %p101
      %p103 = scmp.ne.s32.totalorder %s94, %s95
      %p104 = scmp.eq.s32.totalorder %s23, 0
      %p105 = por %p103, %p104
      %p106 = scmp.ne.s32.totalorder %s94, %s95
      %p107 = scmp.eq.s32.totalorder %s24, 1
      %p108 = por %p106, %p107
      %p110 = scmp.ne.s32.totalorder %s95, %s109
      %p111 = scmp.eq.s32.totalorder %s24, 0
      %p112 = por %p110, %p111
      %s114 = sadd.s32 %s113, 1
      %p117 = scmp.eq.s32.totalorder %s18, 1
      %p118 = scmp.ne.s32.totalorder %s113, %s115
      %p119 = scmp.eq.s32.totalorder %s18, 0
      %p120 = por %p118, %p119
      %p121 = scmp.ne.s32.totalorder %s113, %s115
      %p122 = scmp.eq.s32.totalorder %s23, 1
      %p123 = por %p121, %p122
      %p124 = scmp.ne.s32.totalorder %s115, %s116
      %p125 = scmp.eq.s32.totalorder %s23, 0
      %p126 = por %p124, %p125
      %p127 = scmp.ne.s32.totalorder %s115, %s116
      %p128 = scmp.eq.s32.totalorder %s24, 1
      %p129 = por %p127, %p128
      %p131 = scmp.ne.s32.totalorder %s116, %s130
      %p132 = scmp.eq.s32.totalorder %s24, 0
      %p133 = por %p131, %p132
      %s135 = sadd.s32 %s134, 1
      %p138 = scmp.eq.s32.totalorder %s18, 1
      %p139 = scmp.ne.s32.totalorder %s134, %s136
      %p140 = scmp.eq.s32.totalorder %s18, 0
      %p141 = por %p139, %p140
      %p142 = scmp.ne.s32.totalorder %s134, %s136
      %p143 = scmp.eq.s32.totalorder %s23, 1
      %p144 = por %p142, %p143
      %p145 = scmp.ne.s32.totalorder %s136, %s137
      %p146 = scmp.eq.s32.totalorder %s23, 0
      %p147 = por %p145, %p146
      %p148 = scmp.ne.s32.totalorder %s136, %s137
      %p149 = scmp.eq.s32.totalorder %s24, 1
      %p150 = por %p148, %p149
      %p152 = scmp.ne.s32.totalorder %s137, %s151
      %p153 = scmp.eq.s32.totalorder %s24, 0
      %p154 = por %p152, %p153
      %s155 = ssub.s32 %s25, %s37
      %p156 = scmp.eq.s32.totalorder %s155, 0
      %s158 = sadd.s32 %s157, 1
      %s159 = scalar_select %p156, %s157, %s158
      %p162 = pneg %p156
      %p163 = scmp.eq.s32.totalorder %s18, 1
      %p164 = por %p162, %p163
      %p165 = scmp.ne.s32.totalorder %s157, %s160
      %p166 = scmp.eq.s32.totalorder %s18, 0
      %p167 = por %p165, %p166
      %p168 = scmp.ne.s32.totalorder %s157, %s160
      %p169 = scmp.eq.s32.totalorder %s23, 1
      %p170 = por %p168, %p169
      %p171 = scmp.ne.s32.totalorder %s160, %s161
      %p172 = scmp.eq.s32.totalorder %s23, 0
      %p173 = por %p171, %p172
      %p174 = scmp.ne.s32.totalorder %s160, %s161
      %p175 = scmp.eq.s32.totalorder %s24, 1
      %p176 = por %p174, %p175
      %p178 = scmp.ne.s32.totalorder %s161, %s177
      %p179 = scmp.eq.s32.totalorder %s24, 0
      %p180 = por %p178, %p179
      %p181 = scmp.le.s32.totalorder 1, %s18
      %p182 = scmp.lt.s32.totalorder %s18, 3
      %p183 = pnand %p181, %p182
      %p184 = pneg %p183
      // Predicated region
      $region9: #{tpu_custom_call.1} parent=5 // pred_check
        _
      $region10: #{tpu_custom_call.1} parent=5 // pred_check_branch
        %186 = sbr.rel (%p183) target = $region12
      $region11: #{tpu_custom_call.1} parent=5 // pred_region
        %s187 = ssub.s32 %s18, 1
        // Predicated region
        $region13: #{tpu_custom_call.1} parent=11 // pred_check
          %p188 = pneg %p84
        $region14: #{tpu_custom_call.1} parent=11 // pred_check_branch
          %190 = sbr.rel (%p188) target = $region16
        $region15: #{tpu_custom_call.1} parent=11 // pred_region
          %s191 = smul.u32 16, %s28
          %s193 = ssub.s32 1024, 1024
          %194 = vsyncadd [#allocation6], %s193
          %s195 = smul.addr %s191, 64
          %s196 = scalar_lea.hbm %s1, %s195
          %s197 = sshll.u32 [#allocation5], 4
          %s198 = int_to_ptr.vmem [resolvable:$true] %s197
          %203 = dma.hbm_to_vmem [thread:$0]  %s196, 1024, %s198, [#allocation6], 64, 64, 4
        $region16: #{tpu_custom_call.1} parent=11 // pred_fallthru
          _
        // Predicated region
        $region17: #{tpu_custom_call.1} parent=11 // pred_check
          %p204 = pneg %p105
        $region18: #{tpu_custom_call.1} parent=11 // pred_check_branch
          %206 = sbr.rel (%p204) target = $region20
        $region19: #{tpu_custom_call.1} parent=11 // pred_region
          _
        $region20: #{tpu_custom_call.1} parent=11 // pred_fallthru
          _
        // Predicated region
        $region21: #{tpu_custom_call.1} parent=11 // pred_check
          %p207 = pneg %p126
        $region22: #{tpu_custom_call.1} parent=11 // pred_check_branch
          %209 = sbr.rel (%p207) target = $region24
        $region23: #{tpu_custom_call.1} parent=11 // pred_region
          _
        $region24: #{tpu_custom_call.1} parent=11 // pred_fallthru
          _
        // Predicated region
        $region25: #{tpu_custom_call.1} parent=11 // pred_check
          %p210 = pneg %p147
        $region26: #{tpu_custom_call.1} parent=11 // pred_check_branch
          %212 = sbr.rel (%p210) target = $region28
        $region27: #{tpu_custom_call.1} parent=11 // pred_region
          _
        $region28: #{tpu_custom_call.1} parent=11 // pred_fallthru
          _
      $region12: #{tpu_custom_call.1} parent=5 // pred_fallthru
        _
      %p213 = scmp.lt.s32.totalorder %s18, 2
      // Predicated region
      $region29: #{tpu_custom_call.1} parent=5 // pred_check
        %p214 = pneg %p213
      $region30: #{tpu_custom_call.1} parent=5 // pred_check_branch
        %216 = sbr.rel (%p214) target = $region32
      $region31: #{tpu_custom_call.1} parent=5 // pred_region
        // Predicated region
        $region33: #{tpu_custom_call.1} parent=31 // pred_check
          %p217 = pneg %p52
        $region34: #{tpu_custom_call.1} parent=31 // pred_check_branch
          %219 = sbr.rel (%p217) target = $region36
        $region35: #{tpu_custom_call.1} parent=31 // pred_region
          %s220 = sand.u32 %s42, 1
          %s221 = scalar_lea.sflag [#allocation3], %s220
          %s222 = sand.u32 %s42, 1
          %s223 = smul.addr %s222, 8
          %s224 = scalar_lea.vmem [#allocation2], %s223
          %s226 = ssub.s32 128, 128
          %227 = vsyncadd %s221, %s226
          %s228 = sadd.s32 %s26, %s25
          %s229 = smul.addr %s228, 128
          %s230 = scalar_lea.hbm %s0, %s229
          %s232 = sshll.u32 %s224, 4
          %s233 = int_to_ptr.vmem [resolvable:$true] %s232
          %235 = dma.hbm_to_vmem [thread:$0]  %s230, 128, %s233, %s221
        $region36: #{tpu_custom_call.1} parent=31 // pred_fallthru
          _
      $region32: #{tpu_custom_call.1} parent=5 // pred_fallthru
        _
      %p236 = scmp.le.s32.totalorder 1, %s18
      %p237 = scmp.lt.s32.totalorder %s18, 3
      %p238 = pnand %p236, %p237
      %p239 = pneg %p238
      // Predicated region
      $region37: #{tpu_custom_call.1} parent=5 // pred_check
        _
      $region38: #{tpu_custom_call.1} parent=5 // pred_check_branch
        %241 = sbr.rel (%p238) target = $region40
      $region39: #{tpu_custom_call.1} parent=5 // pred_region
        %s242 = ssub.s32 %s18, 1
        %s243 = sand.u32 %s45, 1
        %s244 = scalar_lea.sflag [#allocation3], %s243
        %s245 = sand.u32 %s45, 1
        %s246 = smul.addr %s245, 8
        %s247 = scalar_lea.vmem [#allocation2], %s246
        // Predicated region
        $region41: #{tpu_custom_call.1} parent=39 // pred_check
          %p248 = pneg %p58
        $region42: #{tpu_custom_call.1} parent=39 // pred_check_branch
          %250 = sbr.rel (%p248) target = $region44
        $region43: #{tpu_custom_call.1} parent=39 // pred_region
          %251 = dma.done %s244, 128
        $region44: #{tpu_custom_call.1} parent=39 // pred_fallthru
          _
        // Predicated region
        $region45: #{tpu_custom_call.1} parent=39 // pred_check
          %p252 = pneg %p84
        $region46: #{tpu_custom_call.1} parent=39 // pred_check_branch
          %254 = sbr.rel (%p252) target = $region48
        $region47: #{tpu_custom_call.1} parent=39 // pred_region
          %255 = dma.done [#allocation6], 1024
        $region48: #{tpu_custom_call.1} parent=39 // pred_fallthru
          _
        %s256 = sand.u32 %s45, 1
        %s257 = scalar_lea.sflag [#allocation3], %s256
        %s258 = sand.u32 %s45, 1
        %s259 = smul.addr %s258, 8
        %s260 = scalar_lea.vmem [#allocation2], %s259
        %p261 = pneg %p58
        %p262 = pneg %p55
        %p263 = pneg %p84
        %p264 = pneg %p81
        %p265 = pneg %p105
        %p266 = pneg %p102
        %p267 = pneg %p126
        %p268 = pneg %p123
        %p269 = pneg %p147
        %p270 = pneg %p144
        %p271 = pneg %p173
        %p272 = pneg %p170
        %s273 = sand.u32 %s160, 1
        %s274 = scalar_lea.sflag [#allocation4], %s273
        %s275 = sand.u32 %s160, 1
        %s276 = smul.addr %s275, 8
        %s277 = scalar_lea.vmem [#allocation7], %s276
        %s278 = smul.u32 16, %s28
        %p280 = scmp.eq.s32.totalorder %s28, 0
        // Predicated region
        $region49: #{tpu_custom_call.1} parent=39 // pred_check
          %p281 = pneg %p280
        $region50: #{tpu_custom_call.1} parent=39 // pred_check_branch
          %283 = sbr.rel (%p281) target = $region52
        $region51: #{tpu_custom_call.1} parent=39 // pred_region
          %284 = vst [vmem:[%s277] sm:$0xff] 0.0
        $region52: #{tpu_custom_call.1} parent=39 // pred_fallthru
          _
        %v285 = vld [vmem:[%s247] sm:$0xff]
        %v286 = vld [vmem:[%s277] sm:$0xff]
        %v287 = vpack.c.bf16 %v285, %v285
        %v288 = vld [vmem:[#allocation5] sm:$0xf]
        %v289 = vld [vmem:[#allocation5 + $0x4] sm:$0xf]
        %v290 = vld [vmem:[#allocation5 + $0x8] sm:$0xf]
        %v291 = vld [vmem:[#allocation5 + $0xc] sm:$0xf]
        %v292 = vld [vmem:[#allocation5 + $0x10] sm:$0xf]
        %v293 = vld [vmem:[#allocation5 + $0x14] sm:$0xf]
        %v294 = vld [vmem:[#allocation5 + $0x18] sm:$0xf]
        %v295 = vld [vmem:[#allocation5 + $0x1c] sm:$0xf]
        %v296 = vld [vmem:[#allocation5 + $0x20] sm:$0xf]
        %v297 = vld [vmem:[#allocation5 + $0x24] sm:$0xf]
        %v298 = vld [vmem:[#allocation5 + $0x28] sm:$0xf]
        %v299 = vld [vmem:[#allocation5 + $0x2c] sm:$0xf]
        %v300 = vld [vmem:[#allocation5 + $0x30] sm:$0xf]
        %v301 = vld [vmem:[#allocation5 + $0x34] sm:$0xf]
        %v302 = vld [vmem:[#allocation5 + $0x38] sm:$0xf]
        %v303 = vld [vmem:[#allocation5 + $0x3c] sm:$0xf]
        %v320 = vunpack.c.l.b16 %v288
        %v321 = vunpack.c.l.b16 %v289
        %v322 = vunpack.c.l.b16 %v290
        %v323 = vunpack.c.l.b16 %v291
        %v324 = vunpack.c.l.b16 %v292
        %v325 = vunpack.c.l.b16 %v293
        %v326 = vunpack.c.l.b16 %v294
        %v327 = vunpack.c.l.b16 %v295
        %v328 = vunpack.c.l.b16 %v296
        %v329 = vunpack.c.l.b16 %v297
        %v330 = vunpack.c.l.b16 %v298
        %v331 = vunpack.c.l.b16 %v299
        %v332 = vunpack.c.l.b16 %v300
        %v333 = vunpack.c.l.b16 %v301
        %v334 = vunpack.c.l.b16 %v302
        %v335 = vunpack.c.l.b16 %v303
        %v336 = vpack.c.b16 %v321, %v320
        %v337 = vpack.c.b16 %v323, %v322
        %v338 = vpack.c.b16 %v325, %v324
        %v339 = vpack.c.b16 %v327, %v326
        %v340 = vpack.c.b16 %v329, %v328
        %v341 = vpack.c.b16 %v331, %v330
        %v342 = vpack.c.b16 %v333, %v332
        %v343 = vpack.c.b16 %v335, %v334
        %352 = vmatprep.subr.bf16.mxu0 0
        %353 = vmatpush1.bf16.msra.mxu0 %v336
        %354 = vmatprep.subr.bf16.mxu0 0
        %355 = vmatpush1.bf16.msra.mxu0 %v337
        %356 = vmatprep.subr.bf16.mxu0 0
        %357 = vmatpush1.bf16.msra.mxu0 %v338
        %358 = vmatprep.subr.bf16.mxu0 0
        %359 = vmatpush1.bf16.msra.mxu0 %v339
        %360 = vmatprep.subr.bf16.mxu0 0
        %361 = vmatpush1.bf16.msra.mxu0 %v340
        %362 = vmatprep.subr.bf16.mxu0 0
        %363 = vmatpush1.bf16.msra.mxu0 %v341
        %364 = vmatprep.subr.bf16.mxu0 0
        %365 = vmatpush1.bf16.msra.mxu0 %v342
        %366 = vmatprep.subr.bf16.mxu0 0
        %367 = vmatpush1.bf16.msra.mxu0 %v343
        %368 = vmatprep.subr.bf16.mxu0 0
        %369 = vmatpush1.bf16.msra.mxu0 0
        %370 = vmatprep.subr.bf16.mxu0 0
        %371 = vmatpush1.bf16.msra.mxu0 0
        %372 = vmatprep.subr.bf16.mxu0 0
        %373 = vmatpush1.bf16.msra.mxu0 0
        %374 = vmatprep.subr.bf16.mxu0 0
        %375 = vmatpush1.bf16.msra.mxu0 0
        %376 = vmatprep.subr.bf16.mxu0 0
        %377 = vmatpush1.bf16.msra.mxu0 0
        %378 = vmatprep.subr.bf16.mxu0 0
        %379 = vmatpush1.bf16.msra.mxu0 0
        %380 = vmatprep.subr.bf16.mxu0 0
        %381 = vmatpush1.bf16.msra.mxu0 0
        %382 = vmatprep.subr.bf16.mxu0 0
        %383 = vmatpush1.bf16.msra.mxu0 0
        %384 = vmatprep.mubr.bf16.mxu0 0
        %385 = vmatmul.mubr.bf16.gmra.mrb[0].mxu0 %v287
        %v386 = vpop.f32.mrb[0].mxu0
        %v387 = vadd.f32 0.0, %v386
        %v388 = vpop.f32.mrb[0].mxu0
        %v389 = vpop.f32.mrb[0].mxu0
        %v390 = vpop.f32.mrb[0].mxu0
        %391 = vdwg.mxu0
        %v392 = vadd.f32 %v286, %v387
        %393 = vst [vmem:[%s277] sm:$0xff] %v392
        %s394 = smul.u32 %s28, 128
        %s395 = sshra.s32 %s394, 7
        %s396 = sand.u32 %s394, 127
        %s397 = scalar_lea.vmem %s277, %s395 [#allocation7]
        %v398 = vld [vmem:[%s397] sm:$0xff]
        %v399 = vadd.f32 %v398, %v285
        %400 = vst [vmem:[%s397] sm:$0xff] %v399
        // Predicated region
        $region53: #{tpu_custom_call.1} parent=39 // pred_check
          %p401 = pneg %p280
        $region54: #{tpu_custom_call.1} parent=39 // pred_check_branch
          %403 = sbr.rel (%p401) target = $region56
        $region55: #{tpu_custom_call.1} parent=39 // pred_region
          %v404 = vld [vmem:[%s2] sm:$0x1]
          %v405 = vld [vmem:[%s3] sm:$0x1]
          %v406 = vld [vmem:[%s4] sm:$0x1]
          %v407 = vld [vmem:[%s277] sm:$0xff]
          %v409 = vlaneseq
          %v410 = vshrl.u32 %v409, 7
          %v411 = vsub.s32 0, %v410
          %v412 = vrot.slane %v404, %v411
          %v414 = vadd.f32 %v407, %v412
          %415 = vadd.xlane.f32.xlu0 %v414
          %v416 = vpop.xlane.xlu0 %415
          %v417 = vmul.f32 %v416, 0.03125
          %v418 = vsub.f32 %v414, %v417
          %v419 = vlaneseq
          %v420 = vand.u32 %v419, 127
          %vm421 = vcmp.lt.s32.totalorder %v420, 32
          %v422 = vsel %vm421, %v418, 0.0
          %v423 = vmul.f32 %v422, %v422
          %424 = vadd.xlane.f32.xlu0 %v423
          %v425 = vpop.xlane.xlu0 %424
          %v426 = vmul.f32 %v425, 0.032258064
          %v427 = vrsqrt.pop %v426
          %v428 = vmul.f32 %v426, %v427
          %vm429 = vcmp.eq.f32.partialorder %v426, inf
          %v430 = vsel %vm429, %v426, %v428
          %vm431 = vcmp.eq.f32.partialorder %v426, 0.0
          %v432 = vand.u32 %v426, 2147483648
          %v433 = vsel %vm431, %v432, %v430
          %v434 = vadd.f32 %v433, 1e-06
          %v435 = vrcp.pop %v434
          %v437 = vlaneseq
          %v438 = vshrl.u32 %v437, 7
          %v439 = vsub.s32 0, %v438
          %v440 = vrot.slane %v405, %v439
          %v442 = vmul.f32 %v440, %v418
          %v443 = vmul.f32 %v442, %v435
          %v445 = vlaneseq
          %v446 = vshrl.u32 %v445, 7
          %v447 = vsub.s32 0, %v446
          %v448 = vrot.slane %v406, %v447
          %v450 = vadd.f32 %v443, %v448
          %451 = vst [vmem:[%s277] sm:$0xff] %v450
        $region56: #{tpu_custom_call.1} parent=39 // pred_fallthru
          _
        %s452 = sand.u32 %s160, 1
        %s453 = scalar_lea.sflag [#allocation4], %s452
        %s454 = sand.u32 %s160, 1
        %s455 = smul.addr %s454, 8
        %s456 = scalar_lea.vmem [#allocation7], %s455
        // Predicated region
        $region57: #{tpu_custom_call.1} parent=39 // pred_check
          %p457 = pneg %p170
        $region58: #{tpu_custom_call.1} parent=39 // pred_check_branch
          %459 = sbr.rel (%p457) target = $region60
        $region59: #{tpu_custom_call.1} parent=39 // pred_region
          %s461 = ssub.s32 128, 128
          %462 = vsyncadd %s453, %s461
          %s463 = smul.addr %s27, 128
          %s464 = scalar_lea.hbm %s5, %s463
          %s466 = sshll.u32 %s456, 4
          %s467 = int_to_ptr.vmem [resolvable:$true] %s466
          %469 = dma.vmem_to_hbm [thread:$0]  %s467, 128, %s464, %s453
        $region60: #{tpu_custom_call.1} parent=39 // pred_fallthru
          _
      $region40: #{tpu_custom_call.1} parent=5 // pred_fallthru
        _
      %p470 = scmp.le.s32.totalorder 2, %s18
      // Predicated region
      $region61: #{tpu_custom_call.1} parent=5 // pred_check
        %p471 = pneg %p470
      $region62: #{tpu_custom_call.1} parent=5 // pred_check_branch
        %473 = sbr.rel (%p471) target = $region64
      $region63: #{tpu_custom_call.1} parent=5 // pred_region
        %s474 = ssub.s32 %s18, 2
        // Predicated region
        $region65: #{tpu_custom_call.1} parent=63 // pred_check
          %p475 = pneg %p176
        $region66: #{tpu_custom_call.1} parent=63 // pred_check_branch
          %477 = sbr.rel (%p475) target = $region68
        $region67: #{tpu_custom_call.1} parent=63 // pred_region
          %s478 = sand.u32 %s161, 1
          %s479 = scalar_lea.sflag [#allocation4], %s478
          %s480 = sand.u32 %s161, 1
          %s481 = smul.addr %s480, 8
          %s482 = scalar_lea.vmem [#allocation7], %s481
          %483 = dma.done %s479, 128
        $region68: #{tpu_custom_call.1} parent=63 // pred_fallthru
          _
      $region64: #{tpu_custom_call.1} parent=5 // pred_fallthru
        _
    $region6: #{tpu_custom_call.1} parent=1 // loop_footer
      %s22 = sadd.s32 1, %s18
    $region7: #{tpu_custom_call.1} parent=1 // loop_footer_branch
      %17 = sbr.rel target = $region3
    $region8: #{tpu_custom_call.1} parent=1 // loop_exit
      _
    %484 = vsyncpa [#allocation3], 1
    %s485 = scalar_lea.sflag [#allocation3], 1
    %486 = vsyncpa %s485, 1
    %487 = vsyncpa [#allocation6], 1
    %488 = vsyncpa [#allocation4], 1
    %s489 = scalar_lea.sflag [#allocation4], 1
    %490 = vsyncpa %s489, 1

</llo_original>
